<compile_context>
chip_gen: v7x
topology: tpu7x:2x2x1
jax: 0.10.0
libtpu: 0.0.40
codegen_flags: <defaults>
</compile_context>

<pallas_src>
import functools

import jax
import jax.numpy as jnp
from jax import lax
from jax.experimental import pallas as pl
from jax.experimental.pallas import tpu as pltpu


# ----------------------------------------------------------------------------
# Small spec helpers (all grids here are 1-D)
# ----------------------------------------------------------------------------
def _full_spec(shape):
    n = len(shape)
    return pl.BlockSpec(shape, lambda i, _n=n: (0,) * _n)


_SCALAR_SPEC = pl.BlockSpec((1, 1), lambda i: (0, 0))
_SCALAR_SHAPE = jax.ShapeDtypeStruct((1, 1), jnp.float32)


# ----------------------------------------------------------------------------
# Kernel 1: output_comp composition + hole/valid MSE + total-variation, fused.
# Inputs are lane-dense (B*C, H*W) views; column j encodes (h, w) as j = h*W+w.
# ----------------------------------------------------------------------------
def _comp_mse_tv_kernel(inp_ref, mask_ref, out_ref, gt_ref,
                        comp_ref, hole_ref, valid_ref, tv_ref, *, width):
    m = mask_ref[...]
    x = inp_ref[...]
    o = out_ref[...]
    g = gt_ref[...]

    comp = m * x + (1.0 - m) * o
    comp_ref[...] = comp

    inv_n = 1.0 / float(m.size)                     # full tensor (grid=(1,))
    dhole = (1.0 - m) * (o - g)                     # (1-mask)*output vs (1-mask)*gt
    dvalid = m * (o - g)                            # mask*output   vs mask*gt
    hole_ref[...] = (jnp.sum(dhole * dhole) * inv_n).reshape(1, 1)
    valid_ref[...] = (jnp.sum(dvalid * dvalid) * inv_n).reshape(1, 1)

    # TV on comp while it is still resident in VMEM (no HBM round-trip).
    # width diffs: pair (j, j+1) valid unless it wraps to the next image row.
    dw = jnp.abs(comp[:, 1:] - comp[:, :-1])
    col = lax.broadcasted_iota(jnp.int32, dw.shape, 1)
    dw = jnp.where(col % width != width - 1, dw, 0.0)
    # height diffs: pair (j, j+W) is always within the same (b, c) image.
    dh = jnp.abs(comp[:, width:] - comp[:, :-width])

    rows, hw = m.shape
    n_w = rows * (hw // width) * (width - 1)
    n_h = rows * (hw - width)
    tv_ref[...] = (jnp.sum(dw) / float(n_w) + jnp.sum(dh) / float(n_h)).reshape(1, 1)


def comp_mse_tv(inp, mask, output, gt):
    b, c, h, w = inp.shape
    shape2 = (b * c, h * w)
    args = [t.reshape(shape2) for t in (inp, mask, output, gt)]
    kernel = functools.partial(_comp_mse_tv_kernel, width=w)
    comp2, hole, valid, tv = pl.pallas_call(
        kernel,
        grid=(1,),
        in_specs=[_full_spec(shape2)] * 4,
        out_specs=[_full_spec(shape2), _SCALAR_SPEC, _SCALAR_SPEC, _SCALAR_SPEC],
        out_shape=[jax.ShapeDtypeStruct(shape2, jnp.float32),
                   _SCALAR_SHAPE, _SCALAR_SHAPE, _SCALAR_SHAPE],
    )(*args)
    return comp2.reshape(b, c, h * w), hole[0, 0], valid[0, 0], tv[0, 0]


# ----------------------------------------------------------------------------
# Kernel 2: fused extractor stage = 1x1 conv (transposed, lane-dense) + ReLU +
# 2x2 avg-pool (as a second MXU matmul against a 0.25-valued pooling matrix).
# Processes the batched (3B, Cin, HW) activations; grid over the image axis.
# ----------------------------------------------------------------------------
def _conv_relu_pool_kernel(x_ref, wt_ref, pool_ref, o_ref):
    x = x_ref[0]                                             # (Cin, HW) lane-dense
    y = jnp.maximum(
        jnp.dot(wt_ref[...], x, preferred_element_type=jnp.float32), 0.0)
    o_ref[0] = jnp.dot(y, pool_ref[...], preferred_element_type=jnp.float32)


def conv_relu_pool(x, wt, pool):
    nb, cin, hw = x.shape
    cout = wt.shape[0]
    hwp = pool.shape[1]
    return pl.pallas_call(
        _conv_relu_pool_kernel,
        grid=(nb,),
        in_specs=[pl.BlockSpec((1, cin, hw), lambda i: (i, 0, 0)),
                  pl.BlockSpec((cout, cin), lambda i: (0, 0)),
                  pl.BlockSpec((hw, hwp), lambda i: (0, 0))],
        out_specs=pl.BlockSpec((1, cout, hwp), lambda i: (i, 0, 0)),
        out_shape=jax.ShapeDtypeStruct((nb, cout, hwp), jnp.float32),
        compiler_params=pltpu.CompilerParams(
            dimension_semantics=("parallel",)),   # 2 TCs on v7x; no-op on v5e/v6e
    )(x, wt, pool)


# ----------------------------------------------------------------------------
# Kernel 3 (per level): perceptual L1s (out/gt and comp/gt) + gram matrices +
# style L1s, all from one read of the batched feature tensor (3B, C, S).
# Layout of dim 0: [0:B] = comp features, [B:2B] = output, [2B:3B] = gt.
# ----------------------------------------------------------------------------
def _level_loss_kernel(f_ref, p_og_ref, p_cg_ref, s_og_ref, s_cg_ref, *, batch):
    f = f_ref[...]                                           # (3B, C, S)
    _, c, s = f.shape
    fc = f[0:batch]
    fo = f[batch:2 * batch]
    fg = f[2 * batch:3 * batch]

    inv_nf = 1.0 / float(batch * c * s)
    p_og_ref[...] = (jnp.sum(jnp.abs(fo - fg)) * inv_nf).reshape(1, 1)
    p_cg_ref[...] = (jnp.sum(jnp.abs(fc - fg)) * inv_nf).reshape(1, 1)

    def gram(fi):  # (C, S) -> (C, C): contract S against S, no explicit transpose
        g = lax.dot_general(fi, fi, (((1,), (1,)), ((), ())),
                            preferred_element_type=jnp.float32)
        return g * (1.0 / float(c * s))

    sty_og = jnp.float32(0.0)
    sty_cg = jnp.float32(0.0)
    for b in range(batch):                                   # tiny, unrolled
        g_gt = gram(f[2 * batch + b])
        sty_og = sty_og + jnp.sum(jnp.abs(gram(f[batch + b]) - g_gt))
        sty_cg = sty_cg + jnp.sum(jnp.abs(gram(f[b]) - g_gt))
    inv_ng = 1.0 / float(batch * c * c)
    s_og_ref[...] = (sty_og * inv_ng).reshape(1, 1)
    s_cg_ref[...] = (sty_cg * inv_ng).reshape(1, 1)


def level_losses(feats, batch):
    nb, c, s = feats.shape
    kernel = functools.partial(_level_loss_kernel, batch=batch)
    outs = pl.pallas_call(
        kernel,
        grid=(1,),
        in_specs=[_full_spec((nb, c, s))],
        out_specs=[_SCALAR_SPEC] * 4,
        out_shape=[_SCALAR_SHAPE] * 4,
    )(feats)
    return tuple(o[0, 0] for o in outs)


# ----------------------------------------------------------------------------
# Synthetic feature extractor (stands in for the VGG-style `extractor` module):
# 3 stages of 1x1 conv + ReLU + 2x2 avg-pool, each stage one fused Pallas call.
# TODO(synk): the real pretrained VGG16 feature extractor is an external module
#             not specified here; this synthetic pyramid keeps the same loss
#             structure (3 feature levels).
# ----------------------------------------------------------------------------
def _pool_matrix(h, w):
    ho, wo = h // 2, w // 2
    idx = jnp.arange(h * w)
    hi, wi = idx // w, idx % w
    out_idx = (hi // 2) * wo + (wi // 2)
    return (out_idx[:, None] == jnp.arange(ho * wo)[None, :]).astype(jnp.float32) * 0.25


def extractor_batched(x, weights_t, pools):
    """x: (NB, Cin, H*W) lane-dense activations. Returns list of 3 feature maps
    in (NB, Cout_l, H_l*W_l) layout (exactly what gram/L1 kernels consume)."""
    feats = []
    for wt, pmat in zip(weights_t, pools):
        x = conv_relu_pool(x, wt, pmat)
        feats.append(x)
    return feats


# ----------------------------------------------------------------------------
# InpaintingLoss.forward
# ----------------------------------------------------------------------------
def inpainting_loss(inp, mask, output, gt, weights):
    b, c, h, w = inp.shape
    loss = {}

    comp2, hole, valid, tv = comp_mse_tv(inp, mask, output, gt)
    loss['hole'] = hole
    loss['valid'] = valid
    loss['tv'] = tv

    # Batch the three extractor passes: [output_comp, output, gt] along dim 0.
    x0 = jnp.concatenate([comp2.reshape(b, c, h * w),
                          output.reshape(b, c, h * w),
                          gt.reshape(b, c, h * w)], axis=0)          # (3B, C, HW)

    weights_t = [jnp.transpose(wm) for wm in weights]                 # (Cout, Cin)
    pools = []
    hh, ww = h, w
    for _ in weights:
        pools.append(_pool_matrix(hh, ww))
        hh, ww = hh // 2, ww // 2

    feats = extractor_batched(x0, weights_t, pools)

    prc = jnp.float32(0.0)
    style = jnp.float32(0.0)
    for f in feats:
        p_og, p_cg, s_og, s_cg = level_losses(f, b)
        prc = prc + p_og + p_cg
        style = style + s_og + s_cg
    loss['prc'] = prc
    loss['style'] = style
    return loss


# ----------------------------------------------------------------------------
# Main
# ----------------------------------------------------------------------------
if __name__ == "__main__":
    key = jax.random.PRNGKey(0)
    k_in, k_mask, k_out, k_gt, k_w1, k_w2, k_w3 = jax.random.split(key, 7)

    B, C, H, W = 2, 4, 16, 16
    inp = jax.random.normal(k_in, (B, C, H, W), jnp.float32)
    mask = (jax.random.uniform(k_mask, (B, C, H, W)) > 0.5).astype(jnp.float32)
    output = jax.random.normal(k_out, (B, C, H, W), jnp.float32)
    gt = jax.random.normal(k_gt, (B, C, H, W), jnp.float32)

    # Deterministic synthetic extractor weights (1x1 convs): 4->8->16->32 channels.
    weights = [
        jax.random.normal(k_w1, (4, 8), jnp.float32) * 0.2,
        jax.random.normal(k_w2, (8, 16), jnp.float32) * 0.2,
        jax.random.normal(k_w3, (16, 32), jnp.float32) * 0.2,
    ]

    losses = inpainting_loss(inp, mask, output, gt, weights)
    jax.block_until_ready(losses)
    print("KERNEL_OK")
</pallas_src>

<mosaic_0001>
module attributes {stable_mosaic.version = 11 : i64} {
  func.func @_comp_mse_tv_kernel(%arg0: i32, %arg1: memref<8x256xf32, #tpu.memory_space<vmem>>, %arg2: memref<8x256xf32, #tpu.memory_space<vmem>>, %arg3: memref<8x256xf32, #tpu.memory_space<vmem>>, %arg4: memref<8x256xf32, #tpu.memory_space<vmem>>, %arg5: memref<8x256xf32, #tpu.memory_space<vmem>>, %arg6: memref<1x1xf32, #tpu.memory_space<vmem>>, %arg7: memref<1x1xf32, #tpu.memory_space<vmem>>, %arg8: memref<1x1xf32, #tpu.memory_space<vmem>>) attributes {dimension_semantics = [#tpu.dimension_semantics<arbitrary>], iteration_bounds = array<i64: 1>, scalar_prefetch = 0 : i64, scratch_operands = 0 : i64, tpu.core_type = #tpu.core_type<tc>, window_params = [{pipeline_mode = #tpu.pipeline_mode<synchronous>, transform_indices = @transform_0, window_bounds = array<i64: 8, 256>}, {pipeline_mode = #tpu.pipeline_mode<synchronous>, transform_indices = @transform_1, window_bounds = array<i64: 8, 256>}, {pipeline_mode = #tpu.pipeline_mode<synchronous>, transform_indices = @transform_2, window_bounds = array<i64: 8, 256>}, {pipeline_mode = #tpu.pipeline_mode<synchronous>, transform_indices = @transform_3, window_bounds = array<i64: 8, 256>}, {pipeline_mode = #tpu.pipeline_mode<synchronous>, transform_indices = @transform_4, window_bounds = array<i64: 8, 256>}, {pipeline_mode = #tpu.pipeline_mode<synchronous>, transform_indices = @transform_5, window_bounds = array<i64: 1, 1>}, {pipeline_mode = #tpu.pipeline_mode<synchronous>, transform_indices = @transform_6, window_bounds = array<i64: 1, 1>}, {pipeline_mode = #tpu.pipeline_mode<synchronous>, transform_indices = @transform_7, window_bounds = array<i64: 1, 1>}]} {
    %c0 = arith.constant 0 : index
    %c0_0 = arith.constant 0 : index
    %0 = vector.load %arg2[%c0, %c0_0] : memref<8x256xf32, #tpu.memory_space<vmem>>, vector<8x256xf32>
    %c0_1 = arith.constant 0 : index
    %c0_2 = arith.constant 0 : index
    %1 = vector.load %arg1[%c0_1, %c0_2] : memref<8x256xf32, #tpu.memory_space<vmem>>, vector<8x256xf32>
    %c0_3 = arith.constant 0 : index
    %c0_4 = arith.constant 0 : index
    %2 = vector.load %arg3[%c0_3, %c0_4] : memref<8x256xf32, #tpu.memory_space<vmem>>, vector<8x256xf32>
    %c0_5 = arith.constant 0 : index
    %c0_6 = arith.constant 0 : index
    %3 = vector.load %arg4[%c0_5, %c0_6] : memref<8x256xf32, #tpu.memory_space<vmem>>, vector<8x256xf32>
    %4 = arith.mulf %0, %1 : vector<8x256xf32>
    %cst = arith.constant 1.000000e+00 : f32
    %5 = vector.broadcast %cst : f32 to vector<8x256xf32>
    %6 = arith.subf %5, %0 : vector<8x256xf32>
    %7 = arith.mulf %6, %2 : vector<8x256xf32>
    %8 = arith.addf %4, %7 : vector<8x256xf32>
    %c0_7 = arith.constant 0 : index
    %c0_8 = arith.constant 0 : index
    %9 = vector.load %arg5[%c0_7, %c0_8] : memref<8x256xf32, #tpu.memory_space<vmem>>, vector<8x256xf32>
    tpu.vector_store %arg5[%c0_7, %c0_8], %8 {strides = array<i32>} : memref<8x256xf32, #tpu.memory_space<vmem>>, vector<8x256xf32>,
    %cst_9 = arith.constant 1.000000e+00 : f32
    %10 = vector.broadcast %cst_9 : f32 to vector<8x256xf32>
    %11 = arith.subf %10, %0 : vector<8x256xf32>
    %12 = arith.subf %2, %3 : vector<8x256xf32>
    %13 = arith.mulf %11, %12 : vector<8x256xf32>
    %14 = arith.subf %2, %3 : vector<8x256xf32>
    %15 = arith.mulf %0, %14 : vector<8x256xf32>
    %16 = arith.mulf %13, %13 : vector<8x256xf32>
    %17 = vector.shape_cast %16 : vector<8x256xf32> to vector<1x8x256xf32>
    %cst_10 = arith.constant dense<0.000000e+00> : vector<1xf32>
    %18 = vector.multi_reduction <add>, %17, %cst_10 [1, 2] : vector<1x8x256xf32> to vector<1xf32>
    %19 = vector.shape_cast %18 : vector<1xf32> to vector<1x1x1xf32>
    %20 = vector.extract %19[0, 0, 0] : f32 from vector<1x1x1xf32>
    %cst_11 = arith.constant 4.8828125E-4 : f32
    %21 = arith.mulf %20, %cst_11 : f32
    %22 = vector.broadcast %21 : f32 to vector<1x1xf32>
    %c0_12 = arith.constant 0 : index
    %c0_13 = arith.constant 0 : index
    %23 = vector.load %arg6[%c0_12, %c0_13] : memref<1x1xf32, #tpu.memory_space<vmem>>, vector<1x1xf32>
    tpu.vector_store %arg6[%c0_12, %c0_13], %22 {strides = array<i32>} : memref<1x1xf32, #tpu.memory_space<vmem>>, vector<1x1xf32>,
    %24 = arith.mulf %15, %15 : vector<8x256xf32>
    %25 = vector.shape_cast %24 : vector<8x256xf32> to vector<1x8x256xf32>
    %cst_14 = arith.constant dense<0.000000e+00> : vector<1xf32>
    %26 = vector.multi_reduction <add>, %25, %cst_14 [1, 2] : vector<1x8x256xf32> to vector<1xf32>
    %27 = vector.shape_cast %26 : vector<1xf32> to vector<1x1x1xf32>
    %28 = vector.extract %27[0, 0, 0] : f32 from vector<1x1x1xf32>
    %cst_15 = arith.constant 4.8828125E-4 : f32
    %29 = arith.mulf %28, %cst_15 : f32
    %30 = vector.broadcast %29 : f32 to vector<1x1xf32>
    %c0_16 = arith.constant 0 : index
    %c0_17 = arith.constant 0 : index
    %31 = vector.load %arg7[%c0_16, %c0_17] : memref<1x1xf32, #tpu.memory_space<vmem>>, vector<1x1xf32>
    tpu.vector_store %arg7[%c0_16, %c0_17], %30 {strides = array<i32>} : memref<1x1xf32, #tpu.memory_space<vmem>>, vector<1x1xf32>,
    %32 = vector.extract_strided_slice %8 {offsets = [0, 1], sizes = [8, 255], strides = [1, 1]} : vector<8x256xf32> to vector<8x255xf32>
    %33 = vector.extract_strided_slice %8 {offsets = [0, 0], sizes = [8, 255], strides = [1, 1]} : vector<8x256xf32> to vector<8x255xf32>
    %34 = arith.subf %32, %33 : vector<8x255xf32>
    %35 = math.absf %34 : vector<8x255xf32>
    %36 = tpu.iota {dimensions = array<i32: 1>} : vector<8x255xi32>
    %c16_i32 = arith.constant 16 : i32
    %c0_i32 = arith.constant 0 : i32
    %37 = arith.cmpi eq, %c16_i32, %c0_i32 : i32
    %c1_i32 = arith.constant 1 : i32
    %38 = arith.select %37, %c1_i32, %c16_i32 : i32
    %39 = vector.broadcast %38 : i32 to vector<8x255xi32>
    %40 = arith.remsi %36, %39 : vector<8x255xi32>
    %c0_i32_18 = arith.constant 0 : i32
    %41 = vector.broadcast %c0_i32_18 : i32 to vector<8x255xi32>
    %42 = arith.cmpi ne, %40, %41 : vector<8x255xi32>
    %c0_i32_19 = arith.constant 0 : i32
    %43 = vector.broadcast %c0_i32_19 : i32 to vector<8x255xi32>
    %44 = arith.cmpi slt, %40, %43 : vector<8x255xi32>
    %c0_i32_20 = arith.constant 0 : i32
    %45 = arith.cmpi slt, %38, %c0_i32_20 : i32
    %46 = vector.broadcast %45 : i1 to vector<8x255xi1>
    %47 = vector.broadcast %46 : vector<8x255xi1> to vector<8x255xi1>
    %48 = arith.xori %44, %47 : vector<8x255xi1>
    %49 = arith.andi %48, %42 : vector<8x255xi1>
    %50 = vector.broadcast %38 : i32 to vector<8x255xi32>
    %51 = arith.addi %40, %50 : vector<8x255xi32>
    %52 = arith.select %49, %51, %40 : vector<8x255xi1>, vector<8x255xi32>
    %c15_i32 = arith.constant 15 : i32
    %53 = vector.broadcast %c15_i32 : i32 to vector<8x255xi32>
    %54 = arith.cmpi ne, %52, %53 : vector<8x255xi32>
    %cst_21 = arith.constant 0.000000e+00 : f32
    %55 = vector.broadcast %cst_21 : f32 to vector<8x255xf32>
    %56 = arith.select %54, %35, %55 : vector<8x255xi1>, vector<8x255xf32>
    %57 = vector.extract_strided_slice %8 {offsets = [0, 16], sizes = [8, 240], strides = [1, 1]} : vector<8x256xf32> to vector<8x240xf32>
    %58 = vector.extract_strided_slice %8 {offsets = [0, 0], sizes = [8, 240], strides = [1, 1]} : vector<8x256xf32> to vector<8x240xf32>
    %59 = arith.subf %57, %58 : vector<8x240xf32>
    %60 = math.absf %59 : vector<8x240xf32>
    %61 = vector.shape_cast %56 : vector<8x255xf32> to vector<1x8x255xf32>
    %cst_22 = arith.constant dense<0.000000e+00> : vector<1xf32>
    %62 = vector.multi_reduction <add>, %61, %cst_22 [1, 2] : vector<1x8x255xf32> to vector<1xf32>
    %63 = vector.shape_cast %62 : vector<1xf32> to vector<1x1x1xf32>
    %64 = vector.extract %63[0, 0, 0] : f32 from vector<1x1x1xf32>
    %cst_23 = arith.constant 1.920000e+03 : f32
    %65 = arith.divf %64, %cst_23 : f32
    %66 = vector.shape_cast %60 : vector<8x240xf32> to vector<1x8x240xf32>
    %cst_24 = arith.constant dense<0.000000e+00> : vector<1xf32>
    %67 = vector.multi_reduction <add>, %66, %cst_24 [1, 2] : vector<1x8x240xf32> to vector<1xf32>
    %68 = vector.shape_cast %67 : vector<1xf32> to vector<1x1x1xf32>
    %69 = vector.extract %68[0, 0, 0] : f32 from vector<1x1x1xf32>
    %cst_25 = arith.constant 1.920000e+03 : f32
    %70 = arith.divf %69, %cst_25 : f32
    %71 = arith.addf %65, %70 : f32
    %72 = vector.broadcast %71 : f32 to vector<1x1xf32>
    %c0_26 = arith.constant 0 : index
    %c0_27 = arith.constant 0 : index
    %73 = vector.load %arg8[%c0_26, %c0_27] : memref<1x1xf32, #tpu.memory_space<vmem>>, vector<1x1xf32>
    tpu.vector_store %arg8[%c0_26, %c0_27], %72 {strides = array<i32>} : memref<1x1xf32, #tpu.memory_space<vmem>>, vector<1x1xf32>,
    return
  }
  func.func @transform_0(%arg0: i32) -> (i32, i32) {
    %c0_i32 = arith.constant 0 : i32
    %c0_i32_0 = arith.constant 0 : i32
    %c0_i32_1 = arith.constant 0 : i32
    return %c0_i32, %c0_i32_0 : i32, i32
  }
  func.func @transform_1(%arg0: i32) -> (i32, i32) {
    %c0_i32 = arith.constant 0 : i32
    %c0_i32_0 = arith.constant 0 : i32
    %c0_i32_1 = arith.constant 0 : i32
    return %c0_i32, %c0_i32_0 : i32, i32
  }
  func.func @transform_2(%arg0: i32) -> (i32, i32) {
    %c0_i32 = arith.constant 0 : i32
    %c0_i32_0 = arith.constant 0 : i32
    %c0_i32_1 = arith.constant 0 : i32
    return %c0_i32, %c0_i32_0 : i32, i32
  }
  func.func @transform_3(%arg0: i32) -> (i32, i32) {
    %c0_i32 = arith.constant 0 : i32
    %c0_i32_0 = arith.constant 0 : i32
    %c0_i32_1 = arith.constant 0 : i32
    return %c0_i32, %c0_i32_0 : i32, i32
  }
  func.func @transform_4(%arg0: i32) -> (i32, i32) {
    %c0_i32 = arith.constant 0 : i32
    %c0_i32_0 = arith.constant 0 : i32
    %c0_i32_1 = arith.constant 0 : i32
    return %c0_i32, %c0_i32_0 : i32, i32
  }
  func.func @transform_5(%arg0: i32) -> (i32, i32) {
    %c0_i32 = arith.constant 0 : i32
    %c0_i32_0 = arith.constant 0 : i32
    %c0_i32_1 = arith.constant 0 : i32
    return %c0_i32, %c0_i32_0 : i32, i32
  }
  func.func @transform_6(%arg0: i32) -> (i32, i32) {
    %c0_i32 = arith.constant 0 : i32
    %c0_i32_0 = arith.constant 0 : i32
    %c0_i32_1 = arith.constant 0 : i32
    return %c0_i32, %c0_i32_0 : i32, i32
  }
  func.func @transform_7(%arg0: i32) -> (i32, i32) {
    %c0_i32 = arith.constant 0 : i32
    %c0_i32_0 = arith.constant 0 : i32
    %c0_i32_1 = arith.constant 0 : i32
    return %c0_i32, %c0_i32_0 : i32, i32
  }
}

</mosaic_0001>

<llo_original>
// kernel: tpu_custom_call.1
$region0: #{tpu_custom_call.1}
  #allocation0 [shape = 'u32[]', space=smem, size = 0x4, offset = 0x4, fixed_abs, tag = 'smem constant byte address 0x4 - core index']
  #allocation1 [shape = 'u32[144,128]{1,0:T(1,128)}', space=vmem, size = 0x12000, scoped, tag = 'internal scratch']
  %s0 = inlined_call_operand.hbm [shape: f32[8,256], index: 0, kind: input, shape index: {}]
  %s1 = inlined_call_operand.hbm [shape: f32[8,256], index: 1, kind: input, shape index: {}]
  %s2 = inlined_call_operand.hbm [shape: f32[8,256], index: 2, kind: input, shape index: {}]
  %s3 = inlined_call_operand.hbm [shape: f32[8,256], index: 3, kind: input, shape index: {}]
  %s4 = inlined_call_operand.hbm [shape: f32[8,256], index: 4, kind: output, shape index: {0}]
  %s5 = inlined_call_operand.hbm [shape: f32[1,1], index: 5, kind: output, shape index: {1}]
  %s6 = inlined_call_operand.hbm [shape: f32[1,1], index: 6, kind: output, shape index: {2}]
  %s7 = inlined_call_operand.hbm [shape: f32[1,1], index: 7, kind: output, shape index: {3}]
  %8 = xla_tuple %s4, %s5, %s6, %s7
  %s9 = sld [smem:[#allocation0]]
  $region66: #{tpu_custom_call.1} parent=0
    _
  %s11 = ssub.s32 1, %s9
  %s12 = scalar_select 0, %s11, %s9
  $region1: #{tpu_custom_call.1} parent=0
    #allocation2 [shape = 'u8[8192]{0}', space=vmem, size = 0x2000, scoped, tag = 'input window, operand 0, single buffered']
    #allocation3 [shape = 's32[1]{0}', space=sflag, size = 0x4, scoped, tag = 'scoped memory for tpu_custom_call.1']
    #allocation4 [shape = 's32[1]{0}', space=sflag, size = 0x4, scoped, tag = 'scoped memory for tpu_custom_call.1']
    #allocation5 [shape = 'u8[8192]{0}', space=vmem, size = 0x2000, scoped, tag = 'input window, operand 1, single buffered']
    #allocation6 [shape = 's32[1]{0}', space=sflag, size = 0x4, scoped, tag = 'scoped memory for tpu_custom_call.1']
    #allocation7 [shape = 'u8[8192]{0}', space=vmem, size = 0x2000, scoped, tag = 'input window, operand 2, single buffered']
    #allocation8 [shape = 'u8[8192]{0}', space=vmem, size = 0x2000, scoped, tag = 'input window, operand 3, single buffered']
    #allocation9 [shape = 's32[1]{0}', space=sflag, size = 0x4, scoped, tag = 'scoped memory for tpu_custom_call.1']
    #allocation10 [shape = 'u8[8192]{0}', space=vmem, size = 0x2000, scoped, tag = 'output window, operand 0, single buffered']
    #allocation11 [shape = 'u8[512]{0}', space=vmem, size = 0x400, scoped, tag = 'output window, operand 1, single buffered']
    #allocation12 [shape = 's32[1]{0}', space=sflag, size = 0x4, scoped, tag = 'scoped memory for tpu_custom_call.1']
    #allocation13 [shape = 'u8[512]{0}', space=vmem, size = 0x400, scoped, tag = 'output window, operand 2, single buffered']
    #allocation14 [shape = 'u8[512]{0}', space=vmem, size = 0x400, scoped, tag = 'output window, operand 3, single buffered']
    #allocation15 [shape = 's32[1]{0}', space=sflag, size = 0x4, scoped, tag = 'scoped memory for tpu_custom_call.1']
    %13 = vsyncpa [#allocation3], 0
    %14 = vsyncpa [#allocation6], 0
    %15 = vsyncpa [#allocation9], 0
    %16 = vsyncpa [#allocation4], 0
    %17 = vsyncpa [#allocation12], 0
    %18 = vsyncpa [#allocation15], 0
    // Predicated region
    $region2: #{tpu_custom_call.1} parent=1 // pred_check
      _
    $region3: #{tpu_custom_call.1} parent=1 // pred_check_branch
      %20 = sbr.rel (0) target = $region5
    $region4: #{tpu_custom_call.1} parent=1 // pred_region
      %s22 = ssub.s32 256, 256
      %23 = vsyncadd [#allocation3], %s22
      %s25 = sshll.u32 [#allocation2], 4
      %s26 = int_to_ptr.vmem [resolvable:$true] %s25
      %28 = dma.hbm_to_vmem [thread:$0]  %s0, 256, %s26, [#allocation3]
    $region5: #{tpu_custom_call.1} parent=1 // pred_fallthru
      _
    // Predicated region
    $region6: #{tpu_custom_call.1} parent=1 // pred_check
      _
    $region7: #{tpu_custom_call.1} parent=1 // pred_check_branch
      %30 = sbr.rel (0) target = $region9
    $region8: #{tpu_custom_call.1} parent=1 // pred_region
      %s32 = ssub.s32 256, 256
      %33 = vsyncadd [#allocation6], %s32
      %s35 = sshll.u32 [#allocation5], 4
      %s36 = int_to_ptr.vmem [resolvable:$true] %s35
      %38 = dma.hbm_to_vmem [thread:$0]  %s1, 256, %s36, [#allocation6]
    $region9: #{tpu_custom_call.1} parent=1 // pred_fallthru
      _
    // Predicated region
    $region10: #{tpu_custom_call.1} parent=1 // pred_check
      _
    $region11: #{tpu_custom_call.1} parent=1 // pred_check_branch
      %40 = sbr.rel (0) target = $region13
    $region12: #{tpu_custom_call.1} parent=1 // pred_region
      %s42 = ssub.s32 256, 256
      %43 = vsyncadd [#allocation6], %s42
      %s45 = sshll.u32 [#allocation7], 4
      %s46 = int_to_ptr.vmem [resolvable:$true] %s45
      %48 = dma.hbm_to_vmem [thread:$0]  %s2, 256, %s46, [#allocation6]
    $region13: #{tpu_custom_call.1} parent=1 // pred_fallthru
      _
    // Predicated region
    $region14: #{tpu_custom_call.1} parent=1 // pred_check
      _
    $region15: #{tpu_custom_call.1} parent=1 // pred_check_branch
      %50 = sbr.rel (0) target = $region17
    $region16: #{tpu_custom_call.1} parent=1 // pred_region
      %s52 = ssub.s32 256, 256
      %53 = vsyncadd [#allocation9], %s52
      %s55 = sshll.u32 [#allocation8], 4
      %s56 = int_to_ptr.vmem [resolvable:$true] %s55
      %58 = dma.hbm_to_vmem [thread:$0]  %s3, 256, %s56, [#allocation9]
    $region17: #{tpu_custom_call.1} parent=1 // pred_fallthru
      _
    // Predicated region
    $region18: #{tpu_custom_call.1} parent=1 // pred_check
      _
    $region19: #{tpu_custom_call.1} parent=1 // pred_check_branch
      %60 = sbr.rel (0) target = $region21
    $region20: #{tpu_custom_call.1} parent=1 // pred_region
      %61 = dma.done [#allocation3], 256
    $region21: #{tpu_custom_call.1} parent=1 // pred_fallthru
      _
    // Predicated region
    $region22: #{tpu_custom_call.1} parent=1 // pred_check
      _
    $region23: #{tpu_custom_call.1} parent=1 // pred_check_branch
      %63 = sbr.rel (0) target = $region25
    $region24: #{tpu_custom_call.1} parent=1 // pred_region
      %64 = dma.done [#allocation6], 256
    $region25: #{tpu_custom_call.1} parent=1 // pred_fallthru
      _
    // Predicated region
    $region26: #{tpu_custom_call.1} parent=1 // pred_check
      _
    $region27: #{tpu_custom_call.1} parent=1 // pred_check_branch
      %66 = sbr.rel (0) target = $region29
    $region28: #{tpu_custom_call.1} parent=1 // pred_region
      %67 = dma.done [#allocation6], 256
    $region29: #{tpu_custom_call.1} parent=1 // pred_fallthru
      _
    // Predicated region
    $region30: #{tpu_custom_call.1} parent=1 // pred_check
      _
    $region31: #{tpu_custom_call.1} parent=1 // pred_check_branch
      %69 = sbr.rel (0) target = $region33
    $region32: #{tpu_custom_call.1} parent=1 // pred_region
      %70 = dma.done [#allocation9], 256
    $region33: #{tpu_custom_call.1} parent=1 // pred_fallthru
      _
    %v71 = vld [vmem:[#allocation5] sm:$0xff]
    %v72 = vld [vmem:[#allocation5 + $0x8] sm:$0xff]
    %v73 = vld [vmem:[#allocation2] sm:$0xff]
    %v74 = vld [vmem:[#allocation2 + $0x8] sm:$0xff]
    %v75 = vld [vmem:[#allocation7] sm:$0xff]
    %v76 = vld [vmem:[#allocation7 + $0x8] sm:$0xff]
    %v77 = vld [vmem:[#allocation8] sm:$0xff]
    %v78 = vld [vmem:[#allocation8 + $0x8] sm:$0xff]
    %v79 = vmul.f32 %v71, %v73
    %v80 = vmul.f32 %v72, %v74
    %v81 = vsub.f32 1.0, %v71
    %v82 = vsub.f32 1.0, %v72
    %v83 = vmul.f32 %v81, %v75
    %v84 = vmul.f32 %v82, %v76
    %v85 = vadd.f32 %v79, %v83
    %v86 = vadd.f32 %v80, %v84
    %87 = vst [vmem:[#allocation10] sm:$0xff] %v85
    %88 = vst [vmem:[#allocation10 + $0x8] sm:$0xff] %v86
    %v89 = vsub.f32 %v75, %v77
    %v90 = vsub.f32 %v76, %v78
    %v91 = vmul.f32 %v81, %v89
    %v92 = vmul.f32 %v82, %v90
    %v93 = vmul.f32 %v71, %v89
    %v94 = vmul.f32 %v72, %v90
    %v95 = vmul.f32 %v91, %v91
    %v96 = vmul.f32 %v92, %v92
    %v97 = vadd.f32 %v95, %v96
    %98 = vadd.xlane.f32.xlu0 %v97
    %v99 = vpop.xlane.xlu0 %98
    %v100 = vrot.slane %v99, 4
    %v101 = vadd.f32 %v99, %v100
    %v102 = vrot.slane %v101, 2
    %v103 = vadd.f32 %v101, %v102
    %v104 = vrot.slane %v103, 1
    %v105 = vadd.f32 %v103, %v104
    %s106 = vtos %v105
    %s107 = smul.f32 %s106, 0.00048828125
    %v108 = vstv %s107
    %vm109 = vcmask 0
    %110 = vst.msk [vmem:[#allocation11] sm:$0x1] %vm109, %v108
    %v111 = vmul.f32 %v93, %v93
    %v112 = vmul.f32 %v94, %v94
    %v113 = vadd.f32 %v111, %v112
    %114 = vadd.xlane.f32.xlu0 %v113
    %v115 = vpop.xlane.xlu0 %114
    %v116 = vrot.slane %v115, 4
    %v117 = vadd.f32 %v115, %v116
    %v118 = vrot.slane %v117, 2
    %v119 = vadd.f32 %v117, %v118
    %v120 = vrot.slane %v119, 1
    %v121 = vadd.f32 %v119, %v120
    %s122 = vtos %v121
    %s123 = smul.f32 %s122, 0.00048828125
    %v124 = vstv %s123
    %125 = vst.msk [vmem:[#allocation13] sm:$0x1] %vm109, %v124
    %128 = vrot.lane.b32.xlu0 %v85, 1
    %v129 = vpop.permute.xlu0 %128
    %130 = vrot.lane.b32.xlu0 %v86, 1
    %v131 = vpop.permute.xlu0 %130
    %vm132 = vcmask 7168
    %v133 = vsel %vm132, %v129, %v131
    %v136 = vsub.f32 %v85, %v129
    %v137 = vsub.f32 %v86, %v133
    %v138 = vand.u32 2147483647, %v136
    %v139 = vand.u32 2147483647, %v137
    %v140 = vlaneseq
    %v141 = vand.u32 %v140, 127
    %v142 = vadd.s32 %v141, 128
    %vm143 = vcmp.lt.s32.totalorder %v141, 0
    %v144 = vsub.s32 0, %v141
    %v145 = vsel %vm143, %v144, %v141
    %v146 = vshrl.u32 %v145, 4
    %v147 = vand.u32 %v145, 15
    %v148 = vsub.s32 0, %v147
    %v149 = vsel %vm143, %v148, %v147
    %vm150 = vcmp.lt.s32.totalorder %v142, 0
    %v151 = vsub.s32 0, %v142
    %v152 = vsel %vm150, %v151, %v142
    %v153 = vshrl.u32 %v152, 4
    %v154 = vand.u32 %v152, 15
    %v155 = vsub.s32 0, %v154
    %v156 = vsel %vm150, %v155, %v154
    %vm157 = vcmp.ne.s32.totalorder %v149, 0
    %vm158 = vcmp.ne.s32.totalorder %v156, 0
    %vm159 = vcmp.lt.s32.totalorder %v149, 0
    %vm160 = vcmp.lt.s32.totalorder %v156, 0
    %vm161 = vmand %vm159, %vm157
    %vm162 = vmand %vm160, %vm158
    %v163 = vadd.s32 %v149, 16
    %v164 = vadd.s32 %v156, 16
    %v165 = vsel %vm161, %v163, %v149
    %v166 = vsel %vm162, %v164, %v156
    %vm167 = vcmp.ne.s32.totalorder %v165, 15
    %vm168 = vcmp.ne.s32.totalorder %v166, 15
    %171 = vrot.lane.b32.xlu0 %v138, 127
    %v172 = vpop.permute.xlu0 %171
    %173 = vrot.lane.b32.xlu0 %v139, 127
    %v174 = vpop.permute.xlu0 %173
    %vm175 = vcmask 1039360
    %v176 = vsel %vm175, %v172, %v174
    %v179 = vsel %vm167, %v176, 0.0
    %v180 = vsel %vm168, %v174, 0.0
    %181 = vrot.lane.b32.xlu0 %v85, 16
    %v182 = vpop.permute.xlu0 %181
    %183 = vrot.lane.b32.xlu0 %v86, 16
    %v184 = vpop.permute.xlu0 %183
    %vm185 = vcmask 130048
    %v186 = vsel %vm185, %v182, %v184
    %v189 = vsub.f32 %v85, %v182
    %v190 = vsub.f32 %v86, %v186
    %v191 = vand.u32 2147483647, %v189
    %v192 = vand.u32 2147483647, %v190
    %v193 = vsel %vm175, %v180, 0.0
    %v194 = vadd.f32 %v179, %v193
    %195 = vadd.xlane.f32.xlu0 %v194
    %v196 = vpop.xlane.xlu0 %195
    %v197 = vrot.slane %v196, 4
    %v198 = vadd.f32 %v196, %v197
    %v199 = vrot.slane %v198, 2
    %v200 = vadd.f32 %v198, %v199
    %v201 = vrot.slane %v200, 1
    %v202 = vadd.f32 %v200, %v201
    %s203 = vtos %v202
    %v204 = vrcp.pop 1920.0
    %s205 = vtos %v204
    %s206 = smul.f32 %s203, %s205
    %209 = vrot.lane.b32.xlu0 %v191, 112
    %v210 = vpop.permute.xlu0 %209
    %211 = vrot.lane.b32.xlu0 %v192, 112
    %v212 = vpop.permute.xlu0 %211
    %vm213 = vcmask 916480
    %v214 = vsel %vm213, %v210, %v212
    %v217 = vsel %vm213, %v212, 0.0
    %v218 = vadd.f32 %v214, %v217
    %219 = vadd.xlane.f32.xlu0 %v218
    %v220 = vpop.xlane.xlu0 %219
    %v221 = vrot.slane %v220, 4
    %v222 = vadd.f32 %v220, %v221
    %v223 = vrot.slane %v222, 2
    %v224 = vadd.f32 %v222, %v223
    %v225 = vrot.slane %v224, 1
    %v226 = vadd.f32 %v224, %v225
    %s227 = vtos %v226
    %v228 = vrcp.pop 1920.0
    %s229 = vtos %v228
    %s230 = smul.f32 %s227, %s229
    %s231 = sadd.f32 %s206, %s230
    %v232 = vstv %s231
    %233 = vst.msk [vmem:[#allocation14] sm:$0x1] %vm109, %v232
    // Predicated region
    $region34: #{tpu_custom_call.1} parent=1 // pred_check
      _
    $region35: #{tpu_custom_call.1} parent=1 // pred_check_branch
      %235 = sbr.rel (0) target = $region37
    $region36: #{tpu_custom_call.1} parent=1 // pred_region
      %s237 = ssub.s32 256, 256
      %238 = vsyncadd [#allocation4], %s237
      %s240 = sshll.u32 [#allocation10], 4
      %s241 = int_to_ptr.vmem [resolvable:$true] %s240
      %243 = dma.vmem_to_hbm [thread:$0]  %s241, 256, %s4, [#allocation4]
    $region37: #{tpu_custom_call.1} parent=1 // pred_fallthru
      _
    // Predicated region
    $region38: #{tpu_custom_call.1} parent=1 // pred_check
      _
    $region39: #{tpu_custom_call.1} parent=1 // pred_check_branch
      %245 = sbr.rel (0) target = $region41
    $region40: #{tpu_custom_call.1} parent=1 // pred_region
      %s247 = ssub.s32 16, 16
      %248 = vsyncadd [#allocation12], %s247
      %s250 = sshll.u32 [#allocation11], 4
      %s251 = int_to_ptr.vmem [resolvable:$true] %s250
      %253 = dma.vmem_to_hbm [thread:$0]  %s251, 16, %s5, [#allocation12]
    $region41: #{tpu_custom_call.1} parent=1 // pred_fallthru
      _
    // Predicated region
    $region42: #{tpu_custom_call.1} parent=1 // pred_check
      _
    $region43: #{tpu_custom_call.1} parent=1 // pred_check_branch
      %255 = sbr.rel (0) target = $region45
    $region44: #{tpu_custom_call.1} parent=1 // pred_region
      %s257 = ssub.s32 16, 16
      %258 = vsyncadd [#allocation12], %s257
      %s260 = sshll.u32 [#allocation13], 4
      %s261 = int_to_ptr.vmem [resolvable:$true] %s260
      %263 = dma.vmem_to_hbm [thread:$0]  %s261, 16, %s6, [#allocation12]
    $region45: #{tpu_custom_call.1} parent=1 // pred_fallthru
      _
    // Predicated region
    $region46: #{tpu_custom_call.1} parent=1 // pred_check
      _
    $region47: #{tpu_custom_call.1} parent=1 // pred_check_branch
      %265 = sbr.rel (0) target = $region49
    $region48: #{tpu_custom_call.1} parent=1 // pred_region
      %s267 = ssub.s32 16, 16
      %268 = vsyncadd [#allocation15], %s267
      %s270 = sshll.u32 [#allocation14], 4
      %s271 = int_to_ptr.vmem [resolvable:$true] %s270
      %273 = dma.vmem_to_hbm [thread:$0]  %s271, 16, %s7, [#allocation15]
    $region49: #{tpu_custom_call.1} parent=1 // pred_fallthru
      _
    // Predicated region
    $region50: #{tpu_custom_call.1} parent=1 // pred_check
      _
    $region51: #{tpu_custom_call.1} parent=1 // pred_check_branch
      %275 = sbr.rel (0) target = $region53
    $region52: #{tpu_custom_call.1} parent=1 // pred_region
      %276 = dma.done [#allocation4], 256
    $region53: #{tpu_custom_call.1} parent=1 // pred_fallthru
      _
    // Predicated region
    $region54: #{tpu_custom_call.1} parent=1 // pred_check
      _
    $region55: #{tpu_custom_call.1} parent=1 // pred_check_branch
      %278 = sbr.rel (0) target = $region57
    $region56: #{tpu_custom_call.1} parent=1 // pred_region
      %279 = dma.done [#allocation12], 16
    $region57: #{tpu_custom_call.1} parent=1 // pred_fallthru
      _
    // Predicated region
    $region58: #{tpu_custom_call.1} parent=1 // pred_check
      _
    $region59: #{tpu_custom_call.1} parent=1 // pred_check_branch
      %281 = sbr.rel (0) target = $region61
    $region60: #{tpu_custom_call.1} parent=1 // pred_region
      %282 = dma.done [#allocation12], 16
    $region61: #{tpu_custom_call.1} parent=1 // pred_fallthru
      _
    // Predicated region
    $region62: #{tpu_custom_call.1} parent=1 // pred_check
      _
    $region63: #{tpu_custom_call.1} parent=1 // pred_check_branch
      %284 = sbr.rel (0) target = $region65
    $region64: #{tpu_custom_call.1} parent=1 // pred_region
      %285 = dma.done [#allocation15], 16
    $region65: #{tpu_custom_call.1} parent=1 // pred_fallthru
      _
    %286 = vsyncpa [#allocation3], 1
    %287 = vsyncpa [#allocation6], 1
    %288 = vsyncpa [#allocation9], 1
    %289 = vsyncpa [#allocation4], 1
    %290 = vsyncpa [#allocation12], 1
    %291 = vsyncpa [#allocation15], 1

</llo_original>
